<compile_context>
chip_gen: v6e
topology: v6e:2x2x1
jax: 0.10.0
libtpu: 0.0.40
codegen_flags: <defaults>
</compile_context>

<pallas_src>
import functools
import math

import jax
import jax.numpy as jnp
from jax.experimental import pallas as pl
from jax.experimental.pallas import tpu as pltpu


# ---------------------------------------------------------------------------
# Pallas kernel: K-tiled  A @ W  ->  + bias  ->  LeakyReLU(0.1)  [-> + residual]
# ---------------------------------------------------------------------------
def _kernel_body(a_ref, w_ref, b_ref, r_ref, o_ref, acc_ref, leaky):
    k = pl.program_id(2)

    @pl.when(k == 0)
    def _():
        acc_ref[...] = jnp.zeros_like(acc_ref)

    a = a_ref[...].astype(jnp.bfloat16)      # no-op if already bf16 (3x3 path)
    acc_ref[...] += jnp.dot(a, w_ref[...], preferred_element_type=jnp.float32)

    @pl.when(k == pl.num_programs(2) - 1)
    def _():
        y = acc_ref[...] + b_ref[...]
        if leaky:
            y = jnp.where(y >= 0, y, 0.1 * y)
        if r_ref is not None:
            y = y + r_ref[...].astype(jnp.float32)
        o_ref[...] = y.astype(o_ref.dtype)


def _make_kernel(leaky, has_res):
    if has_res:
        def kernel(a_ref, w_ref, b_ref, r_ref, o_ref, acc_ref):
            _kernel_body(a_ref, w_ref, b_ref, r_ref, o_ref, acc_ref, leaky)
    else:
        def kernel(a_ref, w_ref, b_ref, o_ref, acc_ref):
            _kernel_body(a_ref, w_ref, b_ref, None, o_ref, acc_ref, leaky)
    return kernel


def _round_up(x, m):
    return (x + m - 1) // m * m


def _choose_tk(K, max_tk=1536):
    """Pick a K-tile that divides K exactly (so no garbage enters the reduction)
    and is a multiple of 128.  Falls back to untiled K."""
    if K <= max_tk:
        return K, 1
    nk = 2
    while nk <= K:
        if K % nk == 0:
            tk = K // nk
            if tk % 128 == 0 and tk <= max_tk:
                return tk, nk
        nk += 1
    return K, 1


@functools.lru_cache(maxsize=None)
def _build_fused_matmul(M, K, Cout, a_dtype, leaky, has_res):
    """Return a jitted pallas_call computing (M,K)@(K,Cout) + bias (+res) -> f32."""
    tm = 256 if M >= 256 else _round_up(M, 16)   # 16-granular for bf16 sublanes
    tn = 256 if Cout >= 256 else 128             # fill the 256-wide MXU when possible
    tk, nk = _choose_tk(K)

    in_specs = [
        pl.BlockSpec((tm, tk), lambda i, j, kk: (i, kk)),   # A
        pl.BlockSpec((tk, tn), lambda i, j, kk: (kk, j)),   # W (bf16, BN-folded)
        pl.BlockSpec((1, tn), lambda i, j, kk: (0, j)),     # bias (f32)
    ]
    if has_res:
        in_specs.append(pl.BlockSpec((tm, tn), lambda i, j, kk: (i, j)))  # residual

    fn = pl.pallas_call(
        _make_kernel(leaky, has_res),
        out_shape=jax.ShapeDtypeStruct((M, Cout), jnp.float32),
        grid=(pl.cdiv(M, tm), pl.cdiv(Cout, tn), nk),
        in_specs=in_specs,
        out_specs=pl.BlockSpec((tm, tn), lambda i, j, kk: (i, j)),
        scratch_shapes=[pltpu.VMEM((tm, tn), jnp.float32)],
        compiler_params=pltpu.CompilerParams(
            dimension_semantics=("parallel", "parallel", "arbitrary"),
            # Explicit budget (actual usage ~4-6 MiB) -- stays well inside
            # v7x's 64 MiB physical VMEM and v5e/v6e's 128 MiB.
            vmem_limit_bytes=48 * 1024 * 1024,
        ),
    )
    return jax.jit(fn)


def fused_matmul_bias_act(a, w2, bias, leaky, res=None):
    """a: (M,K) f32/bf16, w2: (K,Cout) bf16, bias: (Cout,) f32, res: (M,Cout) f32."""
    M, K = a.shape
    Cout = w2.shape[1]
    b2 = bias.reshape(1, Cout).astype(jnp.float32)
    fn = _build_fused_matmul(M, K, Cout, str(a.dtype), bool(leaky), res is not None)
    if res is None:
        return fn(a, w2, b2)
    return fn(a, w2, b2, res)


# ---------------------------------------------------------------------------
# Conv glue around the Pallas kernel
# ---------------------------------------------------------------------------
def conv_fused(x, w, bias, stride, leaky, residual=None):
    """x: (N,H,W,Cin) NHWC f32, w: (k,k,Cin,Cout) HWIO bf16 (BN pre-folded)."""
    ks = w.shape[0]
    N, H, W, Cin = x.shape
    Cout = w.shape[-1]

    if ks == 1:
        # Fast path: 1x1 conv is a plain matmul over flattened spatial.
        xs = x if stride == 1 else x[:, ::stride, ::stride, :]
        Ho, Wo = xs.shape[1], xs.shape[2]
        a = xs.reshape(N * Ho * Wo, Cin)             # stays f32; cast in-kernel
    else:
        pad = ks // 2
        xp = jnp.pad(x, ((0, 0), (pad, pad), (pad, pad), (0, 0))).astype(jnp.bfloat16)
        Hp, Wp = H + 2 * pad, W + 2 * pad
        Ho = (Hp - ks) // stride + 1
        Wo = (Wp - ks) // stride + 1
        cols = []
        for i in range(ks):
            for j in range(ks):
                cols.append(
                    xp[:, i:i + stride * (Ho - 1) + 1:stride,
                          j:j + stride * (Wo - 1) + 1:stride, :]
                )
        patches = jnp.concatenate(cols, axis=-1)     # bf16 im2col (tap-major)
        a = patches.reshape(N * Ho * Wo, ks * ks * Cin)

    w2 = w.reshape(ks * ks * Cin, Cout)
    r = None if residual is None else residual.reshape(N * Ho * Wo, Cout)
    out = fused_matmul_bias_act(a, w2, bias, leaky, r)
    return out.reshape(N, Ho, Wo, Cout)


def upsample2x(x):
    # nn.Upsample(scale_factor=2, mode='nearest') on NHWC
    return jnp.repeat(jnp.repeat(x, 2, axis=1), 2, axis=2)


# ---------------------------------------------------------------------------
# Deterministic parameter construction (mirrors the PyTorch module shapes)
# ---------------------------------------------------------------------------
class ParamGen:
    def __init__(self, key):
        self._key = key
        self._i = 0

    def next(self):
        self._i += 1
        return jax.random.fold_in(self._key, self._i)


def make_conv_bn(pg, cin, cout, ks):
    fan_in = cin * ks * ks
    w = jax.random.normal(pg.next(), (ks, ks, cin, cout), jnp.float32) * math.sqrt(
        2.0 / fan_in
    )
    gamma = 1.0 + 0.1 * jax.random.normal(pg.next(), (cout,), jnp.float32)
    beta = 0.05 * jax.random.normal(pg.next(), (cout,), jnp.float32)
    rmean = 0.05 * jax.random.normal(pg.next(), (cout,), jnp.float32)
    rvar = 1.0 + 0.1 * jnp.abs(jax.random.normal(pg.next(), (cout,), jnp.float32))
    eps = 1e-5
    scale = gamma / jnp.sqrt(rvar + eps)
    bias = beta - rmean * scale
    # Fold BN scale into the weights; store weights in bf16 for the MXU.
    w_folded = (w * scale.reshape(1, 1, 1, -1)).astype(jnp.bfloat16)
    return {"w": w_folded, "bias": bias.astype(jnp.float32)}


def make_conv_bias(pg, cin, cout, ks=1):
    fan_in = cin * ks * ks
    w = jax.random.normal(pg.next(), (ks, ks, cin, cout), jnp.float32) * math.sqrt(
        1.0 / fan_in
    )
    b = 0.01 * jax.random.normal(pg.next(), (cout,), jnp.float32)
    return {"w": w.astype(jnp.bfloat16), "bias": b}


def build_backbone(pg, ch_in=3, nf=32):
    params = {"stem": make_conv_bn(pg, ch_in, nf, 3), "stages": []}
    num_blocks = [1, 2, 8, 8, 4]
    c = nf
    for nb in num_blocks:
        stage = {"down": make_conv_bn(pg, c, c * 2, 3), "res": []}
        c = c * 2
        for _ in range(nb):
            stage["res"].append(
                {"l1": make_conv_bn(pg, c, c // 2, 1),
                 "l2": make_conv_bn(pg, c // 2, c, 3)}
            )
        params["stages"].append(stage)
    return params


def build_embedding(pg, in_f, f0, f1, out_f):
    layers = [
        make_conv_bn(pg, in_f, f0, 1),
        make_conv_bn(pg, f0, f1, 3),
        make_conv_bn(pg, f1, f0, 1),
        make_conv_bn(pg, f0, f1, 3),
        make_conv_bn(pg, f1, f0, 1),
        make_conv_bn(pg, f0, f1, 3),
    ]
    return {"layers": layers, "conv_out": make_conv_bias(pg, f1, out_f, 1)}


def build_yolov3(pg, num_classes=80, num_anchors=3):
    out_f = (1 + 4 + num_classes) * num_anchors
    return {
        "backbone": build_backbone(pg),
        "out0": build_embedding(pg, 1024, 512, 1024, out_f),
        "out1_cbl": make_conv_bn(pg, 512, 256, 1),
        "out1": build_embedding(pg, 512 + 256, 256, 512, out_f),
        "out2_cbl": make_conv_bn(pg, 256, 128, 1),
        "out2": build_embedding(pg, 256 + 128, 128, 256, out_f),
    }


# ---------------------------------------------------------------------------
# Forward pass (mirrors the PyTorch module)
# ---------------------------------------------------------------------------
def apply_cbl(x, p, stride=1):
    return conv_fused(x, p["w"], p["bias"], stride, leaky=True)


def apply_res(x, p):
    h = apply_cbl(x, p["l1"], 1)
    # Residual add fused into the second conv's epilogue (x + leaky(bn(conv(h)))).
    return conv_fused(h, p["l2"]["w"], p["l2"]["bias"], 1, leaky=True, residual=x)


def backbone_forward(x, params):
    outputs = []
    x = apply_cbl(x, params["stem"], 1)
    outputs.append(x)
    for stage in params["stages"]:
        x = apply_cbl(x, stage["down"], 2)
        for r in stage["res"]:
            x = apply_res(x, r)
        outputs.append(x)
    return outputs[-3], outputs[-2], outputs[-1]


def branch(emb, x):
    out_branch = None
    for i, lp in enumerate(emb["layers"]):
        x = apply_cbl(x, lp, 1)
        if i == 4:
            out_branch = x
    co = emb["conv_out"]
    x = conv_fused(x, co["w"], co["bias"], 1, leaky=False)
    return x, out_branch


def yolov3_forward(x_nchw, p):
    x = jnp.transpose(x_nchw, (0, 2, 3, 1))  # NCHW -> NHWC
    x2, x1, x0 = backbone_forward(x, p["backbone"])

    out0, out0_branch = branch(p["out0"], x0)

    t = apply_cbl(out0_branch, p["out1_cbl"], 1)
    t = upsample2x(t)
    x1_in = jnp.concatenate([t, x1], axis=-1)
    out1, out1_branch = branch(p["out1"], x1_in)

    t = apply_cbl(out1_branch, p["out2_cbl"], 1)
    t = upsample2x(t)
    x2_in = jnp.concatenate([t, x2], axis=-1)
    out2, _ = branch(p["out2"], x2_in)

    # return NCHW to match the PyTorch module's output convention
    return [jnp.transpose(o, (0, 3, 1, 2)) for o in (out0, out1, out2)]


# ---------------------------------------------------------------------------
if __name__ == "__main__":
    key = jax.random.PRNGKey(0)
    pg = ParamGen(key)
    params = build_yolov3(pg, num_classes=80, num_anchors=3)

    # small input: batch=2, RGB, 32x32 (smallest spatial size divisible by the
    # /32 backbone stride so all FPN levels exist)
    x = jax.random.normal(jax.random.fold_in(key, 12345), (2, 3, 32, 32), jnp.float32)

    outs = yolov3_forward(x, params)
    outs = jax.block_until_ready(outs)

    assert outs[0].shape == (2, 255, 1, 1), outs[0].shape
    assert outs[1].shape == (2, 255, 2, 2), outs[1].shape
    assert outs[2].shape == (2, 255, 4, 4), outs[2].shape
    assert all(jnp.all(jnp.isfinite(o)) for o in outs)

    print("KERNEL_OK")
</pallas_src>

<mosaic_0001>
module attributes {stable_mosaic.version = 11 : i64} {
  func.func @kernel(%arg0: i32, %arg1: i32, %arg2: i32, %arg3: memref<256x27xbf16, #tpu.memory_space<vmem>>, %arg4: memref<27x128xbf16, #tpu.memory_space<vmem>>, %arg5: memref<1x128xf32, #tpu.memory_space<vmem>>, %arg6: memref<256x128xf32, #tpu.memory_space<vmem>>, %arg7: memref<256x128xf32, #tpu.memory_space<vmem>>) attributes {dimension_semantics = [#tpu.dimension_semantics<parallel>, #tpu.dimension_semantics<parallel>, #tpu.dimension_semantics<arbitrary>], iteration_bounds = array<i64: 8, 1, 1>, scalar_prefetch = 0 : i64, scratch_operands = 1 : i64, tpu.core_type = #tpu.core_type<tc>, window_params = [{transform_indices = @transform_0, window_bounds = array<i64: 256, 27>}, {transform_indices = @transform_1, window_bounds = array<i64: 27, 128>}, {transform_indices = @transform_2, window_bounds = array<i64: 1, 128>}, {transform_indices = @transform_3, window_bounds = array<i64: 256, 128>}]} {
    %c0_i32 = arith.constant 0 : i32
    %0 = arith.cmpi eq, %arg2, %c0_i32 : i32
    %1 = arith.extui %0 : i1 to i32
    %c0_i32_0 = arith.constant 0 : i32
    %2 = arith.cmpi ne, %1, %c0_i32_0 : i32
    scf.if %2 {
      %cst_10 = arith.constant 0.000000e+00 : f32
      %12 = vector.broadcast %cst_10 : f32 to vector<256x128xf32>
      %c0_11 = arith.constant 0 : index
      %c0_12 = arith.constant 0 : index
      %13 = vector.load %arg7[%c0_11, %c0_12] : memref<256x128xf32, #tpu.memory_space<vmem>>, vector<256x128xf32>
      tpu.vector_store %arg7[%c0_11, %c0_12], %12 {strides = array<i32>} : memref<256x128xf32, #tpu.memory_space<vmem>>, vector<256x128xf32>,
    } else {
    }
    %c0 = arith.constant 0 : index
    %c0_1 = arith.constant 0 : index
    %3 = vector.load %arg3[%c0, %c0_1] : memref<256x27xbf16, #tpu.memory_space<vmem>>, vector<256x27xbf16>
    %c0_2 = arith.constant 0 : index
    %c0_3 = arith.constant 0 : index
    %4 = vector.load %arg7[%c0_2, %c0_3] : memref<256x128xf32, #tpu.memory_space<vmem>>, vector<256x128xf32>
    %c0_4 = arith.constant 0 : index
    %c0_5 = arith.constant 0 : index
    %5 = vector.load %arg4[%c0_4, %c0_5] : memref<27x128xbf16, #tpu.memory_space<vmem>>, vector<27x128xbf16>
    %cst = arith.constant dense<0.000000e+00> : vector<256x128xf32>
    %6 = tpu.matmul %3, %5, %cst {dimension_numbers = #tpu.dot_dimension_numbers<[1], [0], [0], [1], [0, 0, 1, 1], [], []>} : vector<256x27xbf16>, vector<27x128xbf16>, vector<256x128xf32> -> vector<256x128xf32>
    %7 = arith.addf %4, %6 : vector<256x128xf32>
    %c0_6 = arith.constant 0 : index
    %c0_7 = arith.constant 0 : index
    %8 = vector.load %arg7[%c0_6, %c0_7] : memref<256x128xf32, #tpu.memory_space<vmem>>, vector<256x128xf32>
    tpu.vector_store %arg7[%c0_6, %c0_7], %7 {strides = array<i32>} : memref<256x128xf32, #tpu.memory_space<vmem>>, vector<256x128xf32>,
    %c0_i32_8 = arith.constant 0 : i32
    %9 = arith.cmpi eq, %arg2, %c0_i32_8 : i32
    %10 = arith.extui %9 : i1 to i32
    %c0_i32_9 = arith.constant 0 : i32
    %11 = arith.cmpi ne, %10, %c0_i32_9 : i32
    scf.if %11 {
      %c0_10 = arith.constant 0 : index
      %c0_11 = arith.constant 0 : index
      %12 = vector.load %arg7[%c0_10, %c0_11] : memref<256x128xf32, #tpu.memory_space<vmem>>, vector<256x128xf32>
      %c0_12 = arith.constant 0 : index
      %c0_13 = arith.constant 0 : index
      %13 = vector.load %arg5[%c0_12, %c0_13] : memref<1x128xf32, #tpu.memory_space<vmem>>, vector<1x128xf32>
      %14 = vector.broadcast %13 : vector<1x128xf32> to vector<256x128xf32>
      %15 = arith.addf %12, %14 : vector<256x128xf32>
      %cst_14 = arith.constant 0.000000e+00 : f32
      %16 = vector.broadcast %cst_14 : f32 to vector<256x128xf32>
      %17 = arith.cmpf oge, %15, %16 : vector<256x128xf32>
      %cst_15 = arith.constant 1.000000e-01 : f32
      %18 = vector.broadcast %cst_15 : f32 to vector<256x128xf32>
      %19 = arith.mulf %18, %15 : vector<256x128xf32>
      %20 = arith.select %17, %15, %19 : vector<256x128xi1>, vector<256x128xf32>
      %c0_16 = arith.constant 0 : index
      %c0_17 = arith.constant 0 : index
      %21 = vector.load %arg6[%c0_16, %c0_17] : memref<256x128xf32, #tpu.memory_space<vmem>>, vector<256x128xf32>
      tpu.vector_store %arg6[%c0_16, %c0_17], %20 {strides = array<i32>} : memref<256x128xf32, #tpu.memory_space<vmem>>, vector<256x128xf32>,
    } else {
    }
    return
  }
  func.func @transform_0(%arg0: i32, %arg1: i32, %arg2: i32) -> (i32, i32) {
    %c0_i32 = arith.constant 0 : i32
    return %arg0, %arg2 : i32, i32
  }
  func.func @transform_1(%arg0: i32, %arg1: i32, %arg2: i32) -> (i32, i32) {
    %c0_i32 = arith.constant 0 : i32
    return %arg2, %arg1 : i32, i32
  }
  func.func @transform_2(%arg0: i32, %arg1: i32, %arg2: i32) -> (i32, i32) {
    %c0_i32 = arith.constant 0 : i32
    %c0_i32_0 = arith.constant 0 : i32
    return %c0_i32, %arg1 : i32, i32
  }
  func.func @transform_3(%arg0: i32, %arg1: i32, %arg2: i32) -> (i32, i32) {
    %c0_i32 = arith.constant 0 : i32
    return %arg0, %arg1 : i32, i32
  }
}

</mosaic_0001>

<llo_original>
// kernel: tpu_custom_call.1
$region0: #{tpu_custom_call.1}
  #allocation0 [shape = 'u32[]', space=smem, size = 0x4, offset = 0x4, fixed_abs, tag = 'smem constant byte address 0x4 - core index']
  #allocation1 [shape = 'u32[144,128]{1,0:T(1,128)}', space=vmem, size = 0x12000, scoped, tag = 'internal scratch']
  #allocation2 [shape = 'f32[256,128]{1,0:T(8,128)}', space=vmem, size = 0x20000, scoped, tag = 'scratch operand']
  %s0 = inlined_call_operand.vmem [shape: bf16[2048,27], index: 0, kind: input, shape index: {}]
  %s1 = inlined_call_operand.vmem [shape: bf16[27,32], index: 1, kind: input, shape index: {}]
  %s2 = inlined_call_operand.vmem [shape: f32[1,32], index: 2, kind: input, shape index: {}]
  %s3 = inlined_call_operand.vmem [shape: f32[2048,32], index: 3, kind: output, shape index: {}]
  %s4 = sld [smem:[#allocation0]]
  $region53: #{tpu_custom_call.1} parent=0
    _
  %s6 = ssub.s32 1, %s4
  %s7 = scalar_select 0, %s6, %s4
  loop: start=0, step=1, limit=10
  $region2: #{tpu_custom_call.1} parent=0 // loop_pre_header
    _
  $region3: #{tpu_custom_call.1} parent=0 // loop_header
    %s9 = sphi 0, %s13
    %p10 = scmp.ge.s32.totalorder %s9, 10
    %s16 = sphi 0, %s35
    %s17 = sphi 0, %s31
    %s18 = sphi 0, %s27
    %s19 = sphi 0, %s16
    %s20 = sphi 0, %s17
    %s21 = sphi 0, %s18
    %s22 = sphi 0, %s19
    %s23 = sphi 0, %s20
    %s24 = sphi 0, %s21
    %s40 = sphi 0, %s42
    %s43 = sphi 0, %s40
    %s44 = sphi 0, %s43
    %s60 = sphi 0, %s44
    %s68 = sphi 0, %s70
    %s71 = sphi 0, %s68
    %s72 = sphi 0, %s71
    %s88 = sphi 0, %s72
    %s94 = sphi 0, %s96
    %s97 = sphi 0, %s94
    %s98 = sphi 0, %s97
    %s114 = sphi 0, %s98
    %s122 = sphi 0, %s124
    %s125 = sphi 0, %s122
    %s126 = sphi 0, %s125
    %s142 = sphi 0, %s126
  $region4: #{tpu_custom_call.1} parent=0 // loop_header_branch
    %12 = sbr.rel (%p10) target = $region8
  $region5: #{tpu_custom_call.1} parent=0 // loop_body
    %s14 = ssub.s32 %s9, 1
    %s15 = ssub.s32 %s9, 2
    %s25 = sadd.s32 1, %s18
    %p26 = scmp.ge.s32.totalorder %s25, 1
    %s27 = scalar_select %p26, 0, %s25
    %s28 = sadd.s32 1, %s17
    %s29 = scalar_select %p26, %s28, %s17
    %p30 = scmp.ge.s32.totalorder %s29, 1
    %s31 = scalar_select %p30, 0, %s29
    %s32 = sadd.s32 1, %s16
    %s33 = scalar_select %p30, %s32, %s16
    %p34 = scmp.ge.s32.totalorder %s33, 8
    %s35 = scalar_select %p34, 0, %s33
    %s36 = ssub.s32 %s16, %s35
    %s37 = ssub.s32 %s18, %s27
    %s38 = sor.u32 %s36, %s37
    %p39 = scmp.eq.s32.totalorder %s38, 0
    %s41 = sadd.s32 %s40, 1
    %s42 = scalar_select %p39, %s40, %s41
    %p45 = pneg %p39
    %p46 = scmp.eq.s32.totalorder %s9, 7
    %p47 = por %p45, %p46
    %p48 = scmp.ne.s32.totalorder %s40, %s43
    %p49 = scmp.eq.s32.totalorder %s9, 0
    %p50 = por %p48, %p49
    %p51 = scmp.ne.s32.totalorder %s40, %s43
    %p52 = scmp.eq.s32.totalorder %s14, 7
    %p53 = por %p51, %p52
    %p54 = scmp.ne.s32.totalorder %s43, %s44
    %p55 = scmp.eq.s32.totalorder %s14, 0
    %p56 = por %p54, %p55
    %p57 = scmp.ne.s32.totalorder %s43, %s44
    %p58 = scmp.eq.s32.totalorder %s15, 7
    %p59 = por %p57, %p58
    %p61 = scmp.ne.s32.totalorder %s44, %s60
    %p62 = scmp.eq.s32.totalorder %s15, 0
    %p63 = por %p61, %p62
    %s64 = ssub.s32 %s18, %s27
    %s65 = ssub.s32 %s17, %s31
    %s66 = sor.u32 %s64, %s65
    %p67 = scmp.eq.s32.totalorder %s66, 0
    %s69 = sadd.s32 %s68, 1
    %s70 = scalar_select %p67, %s68, %s69
    %p73 = pneg %p67
    %p74 = scmp.eq.s32.totalorder %s9, 7
    %p75 = por %p73, %p74
    %p76 = scmp.ne.s32.totalorder %s68, %s71
    %p77 = scmp.eq.s32.totalorder %s9, 0
    %p78 = por %p76, %p77
    %p79 = scmp.ne.s32.totalorder %s68, %s71
    %p80 = scmp.eq.s32.totalorder %s14, 7
    %p81 = por %p79, %p80
    %p82 = scmp.ne.s32.totalorder %s71, %s72
    %p83 = scmp.eq.s32.totalorder %s14, 0
    %p84 = por %p82, %p83
    %p85 = scmp.ne.s32.totalorder %s71, %s72
    %p86 = scmp.eq.s32.totalorder %s15, 7
    %p87 = por %p85, %p86
    %p89 = scmp.ne.s32.totalorder %s72, %s88
    %p90 = scmp.eq.s32.totalorder %s15, 0
    %p91 = por %p89, %p90
    %s92 = ssub.s32 %s17, %s31
    %p93 = scmp.eq.s32.totalorder %s92, 0
    %s95 = sadd.s32 %s94, 1
    %s96 = scalar_select %p93, %s94, %s95
    %p99 = pneg %p93
    %p100 = scmp.eq.s32.totalorder %s9, 7
    %p101 = por %p99, %p100
    %p102 = scmp.ne.s32.totalorder %s94, %s97
    %p103 = scmp.eq.s32.totalorder %s9, 0
    %p104 = por %p102, %p103
    %p105 = scmp.ne.s32.totalorder %s94, %s97
    %p106 = scmp.eq.s32.totalorder %s14, 7
    %p107 = por %p105, %p106
    %p108 = scmp.ne.s32.totalorder %s97, %s98
    %p109 = scmp.eq.s32.totalorder %s14, 0
    %p110 = por %p108, %p109
    %p111 = scmp.ne.s32.totalorder %s97, %s98
    %p112 = scmp.eq.s32.totalorder %s15, 7
    %p113 = por %p111, %p112
    %p115 = scmp.ne.s32.totalorder %s98, %s114
    %p116 = scmp.eq.s32.totalorder %s15, 0
    %p117 = por %p115, %p116
    %s118 = ssub.s32 %s16, %s35
    %s119 = ssub.s32 %s17, %s31
    %s120 = sor.u32 %s118, %s119
    %p121 = scmp.eq.s32.totalorder %s120, 0
    %s123 = sadd.s32 %s122, 1
    %s124 = scalar_select %p121, %s122, %s123
    %p127 = pneg %p121
    %p128 = scmp.eq.s32.totalorder %s9, 7
    %p129 = por %p127, %p128
    %p130 = scmp.ne.s32.totalorder %s122, %s125
    %p131 = scmp.eq.s32.totalorder %s9, 0
    %p132 = por %p130, %p131
    %p133 = scmp.ne.s32.totalorder %s122, %s125
    %p134 = scmp.eq.s32.totalorder %s14, 7
    %p135 = por %p133, %p134
    %p136 = scmp.ne.s32.totalorder %s125, %s126
    %p137 = scmp.eq.s32.totalorder %s14, 0
    %p138 = por %p136, %p137
    %p139 = scmp.ne.s32.totalorder %s125, %s126
    %p140 = scmp.eq.s32.totalorder %s15, 7
    %p141 = por %p139, %p140
    %p143 = scmp.ne.s32.totalorder %s126, %s142
    %p144 = scmp.eq.s32.totalorder %s15, 0
    %p145 = por %p143, %p144
    %p146 = scmp.le.s32.totalorder 1, %s9
    %p147 = scmp.lt.s32.totalorder %s9, 9
    %p148 = pnand %p146, %p147
    %p149 = pneg %p148
    // Predicated region
    $region9: #{tpu_custom_call.1} parent=5 // pred_check
      _
    $region10: #{tpu_custom_call.1} parent=5 // pred_check_branch
      %151 = sbr.rel (%p148) target = $region12
    $region11: #{tpu_custom_call.1} parent=5 // pred_region
      %s152 = ssub.s32 %s9, 1
      // Predicated region
      $region13: #{tpu_custom_call.1} parent=11 // pred_check
        %p153 = pneg %p84
      $region14: #{tpu_custom_call.1} parent=11 // pred_check_branch
        %155 = sbr.rel (%p153) target = $region16
      $region15: #{tpu_custom_call.1} parent=11 // pred_region
        %s156 = smul.u32 4, %s21
        %p157 = scmp.lt.s32.totalorder %s156, 3
        %s158 = scalar_select %p157, %s156, 3
        %p159 = scmp.lt.s32.totalorder %s20, 0
        %s160 = scalar_select %p159, %s20, 0
        %s161 = sadd.s32 %s160, %s158
        %s162 = smul.addr %s161, 4
        %s163 = scalar_lea.vmem %s1, %s162
        %s164 = smul.u32 4, %s21
      $region16: #{tpu_custom_call.1} parent=11 // pred_fallthru
        _
      // Predicated region
      $region17: #{tpu_custom_call.1} parent=11 // pred_check
        %p165 = pneg %p110
      $region18: #{tpu_custom_call.1} parent=11 // pred_check_branch
        %167 = sbr.rel (%p165) target = $region20
      $region19: #{tpu_custom_call.1} parent=11 // pred_region
        %p168 = scmp.lt.s32.totalorder %s20, 0
        %s169 = scalar_select %p168, %s20, 0
        %s170 = scalar_lea.vmem %s2, %s169
      $region20: #{tpu_custom_call.1} parent=11 // pred_fallthru
        _
    $region12: #{tpu_custom_call.1} parent=5 // pred_fallthru
      _
    %p171 = scmp.lt.s32.totalorder %s9, 8
    // Predicated region
    $region21: #{tpu_custom_call.1} parent=5 // pred_check
      %p172 = pneg %p171
    $region22: #{tpu_custom_call.1} parent=5 // pred_check_branch
      %174 = sbr.rel (%p172) target = $region24
    $region23: #{tpu_custom_call.1} parent=5 // pred_region
      // Predicated region
      $region25: #{tpu_custom_call.1} parent=23 // pred_check
        %p175 = pneg %p50
      $region26: #{tpu_custom_call.1} parent=23 // pred_check_branch
        %177 = sbr.rel (%p175) target = $region28
      $region27: #{tpu_custom_call.1} parent=23 // pred_region
        %s178 = smul.u32 32, %s16
        %p179 = scmp.lt.s32.totalorder %s178, 255
        %s180 = scalar_select %p179, %s178, 255
        %p181 = scmp.lt.s32.totalorder %s18, 0
        %s182 = scalar_select %p181, %s18, 0
        %s183 = sadd.s32 %s182, %s180
        %s184 = smul.addr %s183, 4
        %s185 = scalar_lea.vmem %s0, %s184
        %s186 = smul.u32 32, %s16
      $region28: #{tpu_custom_call.1} parent=23 // pred_fallthru
        _
    $region24: #{tpu_custom_call.1} parent=5 // pred_fallthru
      _
    %p187 = scmp.le.s32.totalorder 1, %s9
    %p188 = scmp.lt.s32.totalorder %s9, 9
    %p189 = pnand %p187, %p188
    %p190 = pneg %p189
    // Predicated region
    $region29: #{tpu_custom_call.1} parent=5 // pred_check
      _
    $region30: #{tpu_custom_call.1} parent=5 // pred_check_branch
      %192 = sbr.rel (%p189) target = $region32
    $region31: #{tpu_custom_call.1} parent=5 // pred_region
      %s193 = ssub.s32 %s9, 1
      %s194 = smul.u32 32, %s19
      %p195 = scmp.lt.s32.totalorder %s194, 255
      %s196 = scalar_select %p195, %s194, 255
      %p197 = scmp.lt.s32.totalorder %s21, 0
      %s198 = scalar_select %p197, %s21, 0
      %s199 = sadd.s32 %s198, %s196
      %s200 = smul.addr %s199, 4
      %s201 = scalar_lea.vmem %s0, %s200
      %p202 = pneg %p56
      %p203 = pneg %p53
      %s204 = smul.u32 4, %s21
      %p205 = scmp.lt.s32.totalorder %s204, 3
      %s206 = scalar_select %p205, %s204, 3
      %p207 = scmp.lt.s32.totalorder %s20, 0
      %s208 = scalar_select %p207, %s20, 0
      %s209 = sadd.s32 %s208, %s206
      %s210 = smul.addr %s209, 4
      %s211 = scalar_lea.vmem %s1, %s210
      %p212 = pneg %p84
      %p213 = pneg %p81
      %p214 = scmp.lt.s32.totalorder %s20, 0
      %s215 = scalar_select %p214, %s20, 0
      %s216 = scalar_lea.vmem %s2, %s215
      %p217 = pneg %p110
      %p218 = pneg %p107
      %p219 = pneg %p138
      %p220 = pneg %p135
      %s221 = smul.u32 32, %s19
      %p222 = scmp.lt.s32.totalorder %s221, 255
      %s223 = scalar_select %p222, %s221, 255
      %p224 = scmp.lt.s32.totalorder %s20, 0
      %s225 = scalar_select %p224, %s20, 0
      %s226 = sadd.s32 %s225, %s223
      %s227 = smul.addr %s226, 8
      %s228 = scalar_lea.vmem %s3, %s227
      %s229 = smul.u32 32, %s19
      %p230 = scmp.lt.s32.totalorder %s229, 255
      %s231 = scalar_select %p230, %s229, 255
      %p232 = scmp.lt.s32.totalorder %s21, 0
      %s233 = scalar_select %p232, %s21, 0
      %s234 = sadd.s32 %s233, %s231
      %s235 = smul.addr %s234, 4
      %s236 = scalar_lea.vmem %s0, %s235
      %s237 = smul.u32 32, %s19
      %s238 = smul.u32 4, %s21
      %p239 = scmp.lt.s32.totalorder %s238, 3
      %s240 = scalar_select %p239, %s238, 3
      %p241 = scmp.lt.s32.totalorder %s20, 0
      %s242 = scalar_select %p241, %s20, 0
      %s243 = sadd.s32 %s242, %s240
      %s244 = smul.addr %s243, 4
      %s245 = scalar_lea.vmem %s1, %s244
      %s246 = smul.u32 4, %s21
      %p247 = scmp.lt.s32.totalorder %s20, 0
      %s248 = scalar_select %p247, %s20, 0
      %s249 = scalar_lea.vmem %s2, %s248
      %s250 = smul.u32 32, %s19
      %p251 = scmp.lt.s32.totalorder %s250, 255
      %s252 = scalar_select %p251, %s250, 255
      %p253 = scmp.lt.s32.totalorder %s20, 0
      %s254 = scalar_select %p253, %s20, 0
      %s255 = sadd.s32 %s254, %s252
      %s256 = smul.addr %s255, 8
      %s257 = scalar_lea.vmem %s3, %s256
      %s258 = smul.u32 32, %s19
      %p260 = scmp.eq.s32.totalorder %s21, 0
      // Predicated region
      $region33: #{tpu_custom_call.1} parent=31 // pred_check
        %p261 = pneg %p260
      $region34: #{tpu_custom_call.1} parent=31 // pred_check_branch
        %263 = sbr.rel (%p261) target = $region36
      $region35: #{tpu_custom_call.1} parent=31 // pred_region
        %264 = vst [vmem:[#allocation2] sm:$0xff] 0.0
        %265 = vst [vmem:[#allocation2 + $0x8] sm:$0xff] 0.0
        %266 = vst [vmem:[#allocation2 + $0x10] sm:$0xff] 0.0
        %267 = vst [vmem:[#allocation2 + $0x18] sm:$0xff] 0.0
        %268 = vst [vmem:[#allocation2 + $0x20] sm:$0xff] 0.0
        %269 = vst [vmem:[#allocation2 + $0x28] sm:$0xff] 0.0
        %270 = vst [vmem:[#allocation2 + $0x30] sm:$0xff] 0.0
        %271 = vst [vmem:[#allocation2 + $0x38] sm:$0xff] 0.0
        %272 = vst [vmem:[#allocation2 + $0x40] sm:$0xff] 0.0
        %273 = vst [vmem:[#allocation2 + $0x48] sm:$0xff] 0.0
        %274 = vst [vmem:[#allocation2 + $0x50] sm:$0xff] 0.0
        %275 = vst [vmem:[#allocation2 + $0x58] sm:$0xff] 0.0
        %276 = vst [vmem:[#allocation2 + $0x60] sm:$0xff] 0.0
        %277 = vst [vmem:[#allocation2 + $0x68] sm:$0xff] 0.0
        %278 = vst [vmem:[#allocation2 + $0x70] sm:$0xff] 0.0
        %279 = vst [vmem:[#allocation2 + $0x78] sm:$0xff] 0.0
        %280 = vst [vmem:[#allocation2 + $0x80] sm:$0xff] 0.0
        %281 = vst [vmem:[#allocation2 + $0x88] sm:$0xff] 0.0
        %282 = vst [vmem:[#allocation2 + $0x90] sm:$0xff] 0.0
        %283 = vst [vmem:[#allocation2 + $0x98] sm:$0xff] 0.0
        %284 = vst [vmem:[#allocation2 + $0xa0] sm:$0xff] 0.0
        %285 = vst [vmem:[#allocation2 + $0xa8] sm:$0xff] 0.0
        %286 = vst [vmem:[#allocation2 + $0xb0] sm:$0xff] 0.0
        %287 = vst [vmem:[#allocation2 + $0xb8] sm:$0xff] 0.0
        %288 = vst [vmem:[#allocation2 + $0xc0] sm:$0xff] 0.0
        %289 = vst [vmem:[#allocation2 + $0xc8] sm:$0xff] 0.0
        %290 = vst [vmem:[#allocation2 + $0xd0] sm:$0xff] 0.0
        %291 = vst [vmem:[#allocation2 + $0xd8] sm:$0xff] 0.0
        %292 = vst [vmem:[#allocation2 + $0xe0] sm:$0xff] 0.0
        %293 = vst [vmem:[#allocation2 + $0xe8] sm:$0xff] 0.0
        %294 = vst [vmem:[#allocation2 + $0xf0] sm:$0xff] 0.0
        %295 = vst [vmem:[#allocation2 + $0xf8] sm:$0xff] 0.0
      $region36: #{tpu_custom_call.1} parent=31 // pred_fallthru
        _
      %v296 = vld [vmem:[%s236] sm:$0xf]
      %v297 = vld [vmem:[%s236 + $0x4] sm:$0xf]
      %v298 = vld [vmem:[%s236 + $0x8] sm:$0xf]
      %v299 = vld [vmem:[%s236 + $0xc] sm:$0xf]
      %v300 = vld [vmem:[%s236 + $0x10] sm:$0xf]
      %v301 = vld [vmem:[%s236 + $0x14] sm:$0xf]
      %v302 = vld [vmem:[%s236 + $0x18] sm:$0xf]
      %v303 = vld [vmem:[%s236 + $0x1c] sm:$0xf]
      %v304 = vld [vmem:[%s236 + $0x20] sm:$0xf]
      %v305 = vld [vmem:[%s236 + $0x24] sm:$0xf]
      %v306 = vld [vmem:[%s236 + $0x28] sm:$0xf]
      %v307 = vld [vmem:[%s236 + $0x2c] sm:$0xf]
      %v308 = vld [vmem:[%s236 + $0x30] sm:$0xf]
      %v309 = vld [vmem:[%s236 + $0x34] sm:$0xf]
      %v310 = vld [vmem:[%s236 + $0x38] sm:$0xf]
      %v311 = vld [vmem:[%s236 + $0x3c] sm:$0xf]
      %v312 = vld [vmem:[%s236 + $0x40] sm:$0xf]
      %v313 = vld [vmem:[%s236 + $0x44] sm:$0xf]
      %v314 = vld [vmem:[%s236 + $0x48] sm:$0xf]
      %v315 = vld [vmem:[%s236 + $0x4c] sm:$0xf]
      %v316 = vld [vmem:[%s236 + $0x50] sm:$0xf]
      %v317 = vld [vmem:[%s236 + $0x54] sm:$0xf]
      %v318 = vld [vmem:[%s236 + $0x58] sm:$0xf]
      %v319 = vld [vmem:[%s236 + $0x5c] sm:$0xf]
      %v320 = vld [vmem:[%s236 + $0x60] sm:$0xf]
      %v321 = vld [vmem:[%s236 + $0x64] sm:$0xf]
      %v322 = vld [vmem:[%s236 + $0x68] sm:$0xf]
      %v323 = vld [vmem:[%s236 + $0x6c] sm:$0xf]
      %v324 = vld [vmem:[%s236 + $0x70] sm:$0xf]
      %v325 = vld [vmem:[%s236 + $0x74] sm:$0xf]
      %v326 = vld [vmem:[%s236 + $0x78] sm:$0xf]
      %v327 = vld [vmem:[%s236 + $0x7c] sm:$0xf]
      %v328 = vld [vmem:[#allocation2] sm:$0xff]
      %v329 = vld [vmem:[#allocation2 + $0x8] sm:$0xff]
      %v330 = vld [vmem:[#allocation2 + $0x10] sm:$0xff]
      %v331 = vld [vmem:[#allocation2 + $0x18] sm:$0xff]
      %v332 = vld [vmem:[#allocation2 + $0x20] sm:$0xff]
      %v333 = vld [vmem:[#allocation2 + $0x28] sm:$0xff]
      %v334 = vld [vmem:[#allocation2 + $0x30] sm:$0xff]
      %v335 = vld [vmem:[#allocation2 + $0x38] sm:$0xff]
      %v336 = vld [vmem:[#allocation2 + $0x40] sm:$0xff]
      %v337 = vld [vmem:[#allocation2 + $0x48] sm:$0xff]
      %v338 = vld [vmem:[#allocation2 + $0x50] sm:$0xff]
      %v339 = vld [vmem:[#allocation2 + $0x58] sm:$0xff]
      %v340 = vld [vmem:[#allocation2 + $0x60] sm:$0xff]
      %v341 = vld [vmem:[#allocation2 + $0x68] sm:$0xff]
      %v342 = vld [vmem:[#allocation2 + $0x70] sm:$0xff]
      %v343 = vld [vmem:[#allocation2 + $0x78] sm:$0xff]
      %v344 = vld [vmem:[#allocation2 + $0x80] sm:$0xff]
      %v345 = vld [vmem:[#allocation2 + $0x88] sm:$0xff]
      %v346 = vld [vmem:[#allocation2 + $0x90] sm:$0xff]
      %v347 = vld [vmem:[#allocation2 + $0x98] sm:$0xff]
      %v348 = vld [vmem:[#allocation2 + $0xa0] sm:$0xff]
      %v349 = vld [vmem:[#allocation2 + $0xa8] sm:$0xff]
      %v350 = vld [vmem:[#allocation2 + $0xb0] sm:$0xff]
      %v351 = vld [vmem:[#allocation2 + $0xb8] sm:$0xff]
      %v352 = vld [vmem:[#allocation2 + $0xc0] sm:$0xff]
      %v353 = vld [vmem:[#allocation2 + $0xc8] sm:$0xff]
      %v354 = vld [vmem:[#allocation2 + $0xd0] sm:$0xff]
      %v355 = vld [vmem:[#allocation2 + $0xd8] sm:$0xff]
      %v356 = vld [vmem:[#allocation2 + $0xe0] sm:$0xff]
      %v357 = vld [vmem:[#allocation2 + $0xe8] sm:$0xff]
      %v358 = vld [vmem:[#allocation2 + $0xf0] sm:$0xff]
      %v359 = vld [vmem:[#allocation2 + $0xf8] sm:$0xff]
      %v360 = vld [vmem:[%s245] sm:$0xf]
      %v361 = vld [vmem:[%s245 + $0x4] sm:$0xf]
      %v362 = vld [vmem:[%s245 + $0x8] sm:$0xf]
      %v363 = vld [vmem:[%s245 + $0xc] sm:$0x3]
      %v396 = vunpack.c.l.b16 %v296
      %v397 = vunpack.c.l.b16 %v297
      %v398 = vunpack.c.l.b16 %v298
      %v399 = vunpack.c.l.b16 %v299
      %v400 = vunpack.c.l.b16 %v300
      %v401 = vunpack.c.l.b16 %v301
      %v402 = vunpack.c.l.b16 %v302
      %v403 = vunpack.c.l.b16 %v303
      %v404 = vunpack.c.l.b16 %v304
      %v405 = vunpack.c.l.b16 %v305
      %v406 = vunpack.c.l.b16 %v306
      %v407 = vunpack.c.l.b16 %v307
      %v408 = vunpack.c.l.b16 %v308
      %v409 = vunpack.c.l.b16 %v309
      %v410 = vunpack.c.l.b16 %v310
      %v411 = vunpack.c.l.b16 %v311
      %v412 = vunpack.c.l.b16 %v312
      %v413 = vunpack.c.l.b16 %v313
      %v414 = vunpack.c.l.b16 %v314
      %v415 = vunpack.c.l.b16 %v315
      %v416 = vunpack.c.l.b16 %v316
      %v417 = vunpack.c.l.b16 %v317
      %v418 = vunpack.c.l.b16 %v318
      %v419 = vunpack.c.l.b16 %v319
      %v420 = vunpack.c.l.b16 %v320
      %v421 = vunpack.c.l.b16 %v321
      %v422 = vunpack.c.l.b16 %v322
      %v423 = vunpack.c.l.b16 %v323
      %v424 = vunpack.c.l.b16 %v324
      %v425 = vunpack.c.l.b16 %v325
      %v426 = vunpack.c.l.b16 %v326
      %v427 = vunpack.c.l.b16 %v327
      %v428 = vpack.c.b16 %v397, %v396
      %v429 = vpack.c.b16 %v399, %v398
      %v430 = vpack.c.b16 %v401, %v400
      %v431 = vpack.c.b16 %v403, %v402
      %v432 = vpack.c.b16 %v405, %v404
      %v433 = vpack.c.b16 %v407, %v406
      %v434 = vpack.c.b16 %v409, %v408
      %v435 = vpack.c.b16 %v411, %v410
      %v436 = vpack.c.b16 %v413, %v412
      %v437 = vpack.c.b16 %v415, %v414
      %v438 = vpack.c.b16 %v417, %v416
      %v439 = vpack.c.b16 %v419, %v418
      %v440 = vpack.c.b16 %v421, %v420
      %v441 = vpack.c.b16 %v423, %v422
      %v442 = vpack.c.b16 %v425, %v424
      %v443 = vpack.c.b16 %v427, %v426
      %v448 = vunpack.c.l.b16 %v360
      %v449 = vunpack.c.l.b16 %v361
      %v450 = vunpack.c.l.b16 %v362
      %v451 = vunpack.c.l.b16 %v363
      %v452 = vpack.c.b16 %v449, %v448
      %v453 = vpack.c.b16 %v451, %v450
      %vm455 = vcmask 220160
      %v457 = vsel %vm455, %v428, 0
      %v460 = vsel %vm455, %v429, 0
      %v463 = vsel %vm455, %v430, 0
      %v466 = vsel %vm455, %v431, 0
      %v469 = vsel %vm455, %v432, 0
      %v472 = vsel %vm455, %v433, 0
      %v475 = vsel %vm455, %v434, 0
      %v478 = vsel %vm455, %v435, 0
      %v481 = vsel %vm455, %v436, 0
      %v484 = vsel %vm455, %v437, 0
      %v487 = vsel %vm455, %v438, 0
      %v490 = vsel %vm455, %v439, 0
      %v493 = vsel %vm455, %v440, 0
      %v496 = vsel %vm455, %v441, 0
      %v499 = vsel %vm455, %v442, 0
      %v502 = vsel %vm455, %v443, 0
      %vm504 = vcmask 1044480
      %vm505 = vcmask 1045504
      %v506 = vsel %vm504, 4294967295, 65535
      %v507 = vsel %vm505, %v506, 0
      %v509 = vand.u32 %v453, %v507
      %511 = vmatprep.subr.bf16.mxu0 0
      %512 = vmatpush1.bf16.msra.mxu0 0
      %513 = vmatprep.subr.bf16.mxu0 0
      %514 = vmatpush1.bf16.msra.mxu0 0
      %515 = vmatprep.subr.bf16.mxu0 0
      %516 = vmatpush1.bf16.msra.mxu0 0
      %517 = vmatprep.subr.bf16.mxu0 0
      %518 = vmatpush1.bf16.msra.mxu0 0
      %519 = vmatprep.subr.bf16.mxu0 0
      %520 = vmatpush1.bf16.msra.mxu0 0
      %521 = vmatprep.subr.bf16.mxu0 0
      %522 = vmatpush1.bf16.msra.mxu0 0
      %523 = vmatprep.subr.bf16.mxu0 0
      %524 = vmatpush1.bf16.msra.mxu0 %v509
      %525 = vmatprep.subr.bf16.mxu0 0
      %526 = vmatpush1.bf16.msra.mxu0 %v452
      %527 = vmatprep.subr.bf16.mxu0 0
      %528 = vmatpush2.bf16.msra.mxu0 0
      %529 = vmatprep.subr.bf16.mxu0 0
      %530 = vmatpush2.bf16.msra.mxu0 0
      %531 = vmatprep.subr.bf16.mxu0 0
      %532 = vmatpush2.bf16.msra.mxu0 0
      %533 = vmatprep.subr.bf16.mxu0 0
      %534 = vmatpush2.bf16.msra.mxu0 0
      %535 = vmatprep.subr.bf16.mxu0 0
      %536 = vmatpush2.bf16.msra.mxu0 0
      %537 = vmatprep.subr.bf16.mxu0 0
      %538 = vmatpush2.bf16.msra.mxu0 0
      %539 = vmatprep.subr.bf16.mxu0 0
      %540 = vmatpush2.bf16.msra.mxu0 0
      %541 = vmatprep.subr.bf16.mxu0 0
      %542 = vmatpush2.bf16.msra.mxu0 0
      %543 = vmatprep.mubr.bf16.mxu0 0
      %544 = vmatmul.mubr.bf16.gmra.mxu0 %v457
      %v545 = vpop.f32.mrf.mxu0
      %v546 = vadd.f32 0.0, %v545
      %v547 = vpop.f32.mrf.mxu0
      %v548 = vpop.f32.mrf.mxu0
      %v549 = vadd.f32 0.0, %v548
      %v550 = vpop.f32.mrf.mxu0
      %551 = vmatprep.mubr.bf16.mxu0 0
      %552 = vmatmul.mubr.bf16.gmra.mxu0 %v460
      %v553 = vpop.f32.mrf.mxu0
      %v554 = vadd.f32 0.0, %v553
      %v555 = vpop.f32.mrf.mxu0
      %v556 = vpop.f32.mrf.mxu0
      %v557 = vadd.f32 0.0, %v556
      %v558 = vpop.f32.mrf.mxu0
      %559 = vmatprep.mubr.bf16.mxu0 0
      %560 = vmatmul.mubr.bf16.gmra.mxu0 %v463
      %v561 = vpop.f32.mrf.mxu0
      %v562 = vadd.f32 0.0, %v561
      %v563 = vpop.f32.mrf.mxu0
      %v564 = vpop.f32.mrf.mxu0
      %v565 = vadd.f32 0.0, %v564
      %v566 = vpop.f32.mrf.mxu0
      %567 = vmatprep.mubr.bf16.mxu0 0
      %568 = vmatmul.mubr.bf16.gmra.mxu0 %v466
      %v569 = vpop.f32.mrf.mxu0
      %v570 = vadd.f32 0.0, %v569
      %v571 = vpop.f32.mrf.mxu0
      %v572 = vpop.f32.mrf.mxu0
      %v573 = vadd.f32 0.0, %v572
      %v574 = vpop.f32.mrf.mxu0
      %575 = vmatprep.mubr.bf16.mxu0 0
      %576 = vmatmul.mubr.bf16.gmra.mxu0 %v469
      %v577 = vpop.f32.mrf.mxu0
      %v578 = vadd.f32 0.0, %v577
      %v579 = vpop.f32.mrf.mxu0
      %v580 = vpop.f32.mrf.mxu0
      %v581 = vadd.f32 0.0, %v580
      %v582 = vpop.f32.mrf.mxu0
      %583 = vmatprep.mubr.bf16.mxu0 0
      %584 = vmatmul.mubr.bf16.gmra.mxu0 %v472
      %v585 = vpop.f32.mrf.mxu0
      %v586 = vadd.f32 0.0, %v585
      %v587 = vpop.f32.mrf.mxu0
      %v588 = vpop.f32.mrf.mxu0
      %v589 = vadd.f32 0.0, %v588
      %v590 = vpop.f32.mrf.mxu0
      %591 = vmatprep.mubr.bf16.mxu0 0
      %592 = vmatmul.mubr.bf16.gmra.mxu0 %v475
      %v593 = vpop.f32.mrf.mxu0
      %v594 = vadd.f32 0.0, %v593
      %v595 = vpop.f32.mrf.mxu0
      %v596 = vpop.f32.mrf.mxu0
      %v597 = vadd.f32 0.0, %v596
      %v598 = vpop.f32.mrf.mxu0
      %599 = vmatprep.mubr.bf16.mxu0 0
      %600 = vmatmul.mubr.bf16.gmra.mxu0 %v478
      %v601 = vpop.f32.mrf.mxu0
      %v602 = vadd.f32 0.0, %v601
      %v603 = vpop.f32.mrf.mxu0
      %v604 = vpop.f32.mrf.mxu0
      %v605 = vadd.f32 0.0, %v604
      %v606 = vpop.f32.mrf.mxu0
      %607 = vmatprep.mubr.bf16.mxu0 0
      %608 = vmatmul.mubr.bf16.gmra.mxu0 %v481
      %v609 = vpop.f32.mrf.mxu0
      %v610 = vadd.f32 0.0, %v609
      %v611 = vpop.f32.mrf.mxu0
      %v612 = vpop.f32.mrf.mxu0
      %v613 = vadd.f32 0.0, %v612
      %v614 = vpop.f32.mrf.mxu0
      %615 = vmatprep.mubr.bf16.mxu0 0
      %616 = vmatmul.mubr.bf16.gmra.mxu0 %v484
      %v617 = vpop.f32.mrf.mxu0
      %v618 = vadd.f32 0.0, %v617
      %v619 = vpop.f32.mrf.mxu0
      %v620 = vpop.f32.mrf.mxu0
      %v621 = vadd.f32 0.0, %v620
      %v622 = vpop.f32.mrf.mxu0
      %623 = vmatprep.mubr.bf16.mxu0 0
      %624 = vmatmul.mubr.bf16.gmra.mxu0 %v487
      %v625 = vpop.f32.mrf.mxu0
      %v626 = vadd.f32 0.0, %v625
      %v627 = vpop.f32.mrf.mxu0
      %v628 = vpop.f32.mrf.mxu0
      %v629 = vadd.f32 0.0, %v628
      %v630 = vpop.f32.mrf.mxu0
      %631 = vmatprep.mubr.bf16.mxu0 0
      %632 = vmatmul.mubr.bf16.gmra.mxu0 %v490
      %v633 = vpop.f32.mrf.mxu0
      %v634 = vadd.f32 0.0, %v633
      %v635 = vpop.f32.mrf.mxu0
      %v636 = vpop.f32.mrf.mxu0
      %v637 = vadd.f32 0.0, %v636
      %v638 = vpop.f32.mrf.mxu0
      %639 = vmatprep.mubr.bf16.mxu0 0
      %640 = vmatmul.mubr.bf16.gmra.mxu0 %v493
      %v641 = vpop.f32.mrf.mxu0
      %v642 = vadd.f32 0.0, %v641
      %v643 = vpop.f32.mrf.mxu0
      %v644 = vpop.f32.mrf.mxu0
      %v645 = vadd.f32 0.0, %v644
      %v646 = vpop.f32.mrf.mxu0
      %647 = vmatprep.mubr.bf16.mxu0 0
      %648 = vmatmul.mubr.bf16.gmra.mxu0 %v496
      %v649 = vpop.f32.mrf.mxu0
      %v650 = vadd.f32 0.0, %v649
      %v651 = vpop.f32.mrf.mxu0
      %v652 = vpop.f32.mrf.mxu0
      %v653 = vadd.f32 0.0, %v652
      %v654 = vpop.f32.mrf.mxu0
      %655 = vmatprep.mubr.bf16.mxu0 0
      %656 = vmatmul.mubr.bf16.gmra.mxu0 %v499
      %v657 = vpop.f32.mrf.mxu0
      %v658 = vadd.f32 0.0, %v657
      %v659 = vpop.f32.mrf.mxu0
      %v660 = vpop.f32.mrf.mxu0
      %v661 = vadd.f32 0.0, %v660
      %v662 = vpop.f32.mrf.mxu0
      %663 = vmatprep.mubr.bf16.mxu0 0
      %664 = vmatmul.mubr.bf16.gmra.mxu0 %v502
      %v665 = vpop.f32.mrf.mxu0
      %v666 = vadd.f32 0.0, %v665
      %v667 = vpop.f32.mrf.mxu0
      %v668 = vpop.f32.mrf.mxu0
      %v669 = vadd.f32 0.0, %v668
      %v670 = vpop.f32.mrf.mxu0
      %671 = vdwg.mxu0
      %v672 = vadd.f32 %v328, %v546
      %v673 = vadd.f32 %v329, %v549
      %v674 = vadd.f32 %v330, %v554
      %v675 = vadd.f32 %v331, %v557
      %v676 = vadd.f32 %v332, %v562
      %v677 = vadd.f32 %v333, %v565
      %v678 = vadd.f32 %v334, %v570
      %v679 = vadd.f32 %v335, %v573
      %v680 = vadd.f32 %v336, %v578
      %v681 = vadd.f32 %v337, %v581
      %v682 = vadd.f32 %v338, %v586
      %v683 = vadd.f32 %v339, %v589
      %v684 = vadd.f32 %v340, %v594
      %v685 = vadd.f32 %v341, %v597
      %v686 = vadd.f32 %v342, %v602
      %v687 = vadd.f32 %v343, %v605
      %v688 = vadd.f32 %v344, %v610
      %v689 = vadd.f32 %v345, %v613
      %v690 = vadd.f32 %v346, %v618
      %v691 = vadd.f32 %v347, %v621
      %v692 = vadd.f32 %v348, %v626
      %v693 = vadd.f32 %v349, %v629
      %v694 = vadd.f32 %v350, %v634
      %v695 = vadd.f32 %v351, %v637
      %v696 = vadd.f32 %v352, %v642
      %v697 = vadd.f32 %v353, %v645
      %v698 = vadd.f32 %v354, %v650
      %v699 = vadd.f32 %v355, %v653
      %v700 = vadd.f32 %v356, %v658
      %v701 = vadd.f32 %v357, %v661
      %v702 = vadd.f32 %v358, %v666
      %v703 = vadd.f32 %v359, %v669
      %704 = vst [vmem:[#allocation2] sm:$0xff] %v672
      %705 = vst [vmem:[#allocation2 + $0x8] sm:$0xff] %v673
      %706 = vst [vmem:[#allocation2 + $0x10] sm:$0xff] %v674
      %707 = vst [vmem:[#allocation2 + $0x18] sm:$0xff] %v675
      %708 = vst [vmem:[#allocation2 + $0x20] sm:$0xff] %v676
      %709 = vst [vmem:[#allocation2 + $0x28] sm:$0xff] %v677
      %710 = vst [vmem:[#allocation2 + $0x30] sm:$0xff] %v678
      %711 = vst [vmem:[#allocation2 + $0x38] sm:$0xff] %v679
      %712 = vst [vmem:[#allocation2 + $0x40] sm:$0xff] %v680
      %713 = vst [vmem:[#allocation2 + $0x48] sm:$0xff] %v681
      %714 = vst [vmem:[#allocation2 + $0x50] sm:$0xff] %v682
      %715 = vst [vmem:[#allocation2 + $0x58] sm:$0xff] %v683
      %716 = vst [vmem:[#allocation2 + $0x60] sm:$0xff] %v684
      %717 = vst [vmem:[#allocation2 + $0x68] sm:$0xff] %v685
      %718 = vst [vmem:[#allocation2 + $0x70] sm:$0xff] %v686
      %719 = vst [vmem:[#allocation2 + $0x78] sm:$0xff] %v687
      %720 = vst [vmem:[#allocation2 + $0x80] sm:$0xff] %v688
      %721 = vst [vmem:[#allocation2 + $0x88] sm:$0xff] %v689
      %722 = vst [vmem:[#allocation2 + $0x90] sm:$0xff] %v690
      %723 = vst [vmem:[#allocation2 + $0x98] sm:$0xff] %v691
      %724 = vst [vmem:[#allocation2 + $0xa0] sm:$0xff] %v692
      %725 = vst [vmem:[#allocation2 + $0xa8] sm:$0xff] %v693
      %726 = vst [vmem:[#allocation2 + $0xb0] sm:$0xff] %v694
      %727 = vst [vmem:[#allocation2 + $0xb8] sm:$0xff] %v695
      %728 = vst [vmem:[#allocation2 + $0xc0] sm:$0xff] %v696
      %729 = vst [vmem:[#allocation2 + $0xc8] sm:$0xff] %v697
      %730 = vst [vmem:[#allocation2 + $0xd0] sm:$0xff] %v698
      %731 = vst [vmem:[#allocation2 + $0xd8] sm:$0xff] %v699
      %732 = vst [vmem:[#allocation2 + $0xe0] sm:$0xff] %v700
      %733 = vst [vmem:[#allocation2 + $0xe8] sm:$0xff] %v701
      %734 = vst [vmem:[#allocation2 + $0xf0] sm:$0xff] %v702
      %735 = vst [vmem:[#allocation2 + $0xf8] sm:$0xff] %v703
      // Predicated region
      $region37: #{tpu_custom_call.1} parent=31 // pred_check
        %p736 = pneg %p260
      $region38: #{tpu_custom_call.1} parent=31 // pred_check_branch
        %738 = sbr.rel (%p736) target = $region40
      $region39: #{tpu_custom_call.1} parent=31 // pred_region
        %v739 = vld [vmem:[#allocation2] sm:$0xff]
        %v740 = vld [vmem:[#allocation2 + $0x8] sm:$0xff]
        %v741 = vld [vmem:[#allocation2 + $0x10] sm:$0xff]
        %v742 = vld [vmem:[#allocation2 + $0x18] sm:$0xff]
        %v743 = vld [vmem:[#allocation2 + $0x20] sm:$0xff]
        %v744 = vld [vmem:[#allocation2 + $0x28] sm:$0xff]
        %v745 = vld [vmem:[#allocation2 + $0x30] sm:$0xff]
        %v746 = vld [vmem:[#allocation2 + $0x38] sm:$0xff]
        %v747 = vld [vmem:[#allocation2 + $0x40] sm:$0xff]
        %v748 = vld [vmem:[#allocation2 + $0x48] sm:$0xff]
        %v749 = vld [vmem:[#allocation2 + $0x50] sm:$0xff]
        %v750 = vld [vmem:[#allocation2 + $0x58] sm:$0xff]
        %v751 = vld [vmem:[#allocation2 + $0x60] sm:$0xff]
        %v752 = vld [vmem:[#allocation2 + $0x68] sm:$0xff]
        %v753 = vld [vmem:[#allocation2 + $0x70] sm:$0xff]
        %v754 = vld [vmem:[#allocation2 + $0x78] sm:$0xff]
        %v755 = vld [vmem:[#allocation2 + $0x80] sm:$0xff]
        %v756 = vld [vmem:[#allocation2 + $0x88] sm:$0xff]
        %v757 = vld [vmem:[#allocation2 + $0x90] sm:$0xff]
        %v758 = vld [vmem:[#allocation2 + $0x98] sm:$0xff]
        %v759 = vld [vmem:[#allocation2 + $0xa0] sm:$0xff]
        %v760 = vld [vmem:[#allocation2 + $0xa8] sm:$0xff]
        %v761 = vld [vmem:[#allocation2 + $0xb0] sm:$0xff]
        %v762 = vld [vmem:[#allocation2 + $0xb8] sm:$0xff]
        %v763 = vld [vmem:[#allocation2 + $0xc0] sm:$0xff]
        %v764 = vld [vmem:[#allocation2 + $0xc8] sm:$0xff]
        %v765 = vld [vmem:[#allocation2 + $0xd0] sm:$0xff]
        %v766 = vld [vmem:[#allocation2 + $0xd8] sm:$0xff]
        %v767 = vld [vmem:[#allocation2 + $0xe0] sm:$0xff]
        %v768 = vld [vmem:[#allocation2 + $0xe8] sm:$0xff]
        %v769 = vld [vmem:[#allocation2 + $0xf0] sm:$0xff]
        %v770 = vld [vmem:[#allocation2 + $0xf8] sm:$0xff]
        %v771 = vld [vmem:[%s249] sm:$0x1]
        %v773 = vlaneseq
        %v774 = vshrl.u32 %v773, 7
        %v775 = vsub.s32 0, %v774
        %v776 = vrot.slane %v771, %v775
        %v778 = vadd.f32 %v739, %v776
        %v779 = vadd.f32 %v740, %v776
        %v780 = vadd.f32 %v741, %v776
        %v781 = vadd.f32 %v742, %v776
        %v782 = vadd.f32 %v743, %v776
        %v783 = vadd.f32 %v744, %v776
        %v784 = vadd.f32 %v745, %v776
        %v785 = vadd.f32 %v746, %v776
        %v786 = vadd.f32 %v747, %v776
        %v787 = vadd.f32 %v748, %v776
        %v788 = vadd.f32 %v749, %v776
        %v789 = vadd.f32 %v750, %v776
        %v790 = vadd.f32 %v751, %v776
        %v791 = vadd.f32 %v752, %v776
        %v792 = vadd.f32 %v753, %v776
        %v793 = vadd.f32 %v754, %v776
        %v794 = vadd.f32 %v755, %v776
        %v795 = vadd.f32 %v756, %v776
        %v796 = vadd.f32 %v757, %v776
        %v797 = vadd.f32 %v758, %v776
        %v798 = vadd.f32 %v759, %v776
        %v799 = vadd.f32 %v760, %v776
        %v800 = vadd.f32 %v761, %v776
        %v801 = vadd.f32 %v762, %v776
        %v802 = vadd.f32 %v763, %v776
        %v803 = vadd.f32 %v764, %v776
        %v804 = vadd.f32 %v765, %v776
        %v805 = vadd.f32 %v766, %v776
        %v806 = vadd.f32 %v767, %v776
        %v807 = vadd.f32 %v768, %v776
        %v808 = vadd.f32 %v769, %v776
        %v809 = vadd.f32 %v770, %v776
        %vm810 = vcmp.ge.f32.partialorder %v778, 0.0
        %vm811 = vcmp.ge.f32.partialorder %v779, 0.0
        %vm812 = vcmp.ge.f32.partialorder %v780, 0.0
        %vm813 = vcmp.ge.f32.partialorder %v781, 0.0
        %vm814 = vcmp.ge.f32.partialorder %v782, 0.0
        %vm815 = vcmp.ge.f32.partialorder %v783, 0.0
        %vm816 = vcmp.ge.f32.partialorder %v784, 0.0
        %vm817 = vcmp.ge.f32.partialorder %v785, 0.0
        %vm818 = vcmp.ge.f32.partialorder %v786, 0.0
        %vm819 = vcmp.ge.f32.partialorder %v787, 0.0
        %vm820 = vcmp.ge.f32.partialorder %v788, 0.0
        %vm821 = vcmp.ge.f32.partialorder %v789, 0.0
        %vm822 = vcmp.ge.f32.partialorder %v790, 0.0
        %vm823 = vcmp.ge.f32.partialorder %v791, 0.0
        %vm824 = vcmp.ge.f32.partialorder %v792, 0.0
        %vm825 = vcmp.ge.f32.partialorder %v793, 0.0
        %vm826 = vcmp.ge.f32.partialorder %v794, 0.0
        %vm827 = vcmp.ge.f32.partialorder %v795, 0.0
        %vm828 = vcmp.ge.f32.partialorder %v796, 0.0
        %vm829 = vcmp.ge.f32.partialorder %v797, 0.0
        %vm830 = vcmp.ge.f32.partialorder %v798, 0.0
        %vm831 = vcmp.ge.f32.partialorder %v799, 0.0
        %vm832 = vcmp.ge.f32.partialorder %v800, 0.0
        %vm833 = vcmp.ge.f32.partialorder %v801, 0.0
        %vm834 = vcmp.ge.f32.partialorder %v802, 0.0
        %vm835 = vcmp.ge.f32.partialorder %v803, 0.0
        %vm836 = vcmp.ge.f32.partialorder %v804, 0.0
        %vm837 = vcmp.ge.f32.partialorder %v805, 0.0
        %vm838 = vcmp.ge.f32.partialorder %v806, 0.0
        %vm839 = vcmp.ge.f32.partialorder %v807, 0.0
        %vm840 = vcmp.ge.f32.partialorder %v808, 0.0
        %vm841 = vcmp.ge.f32.partialorder %v809, 0.0
        %v842 = vmul.f32 %v778, 0.1
        %v843 = vmul.f32 %v779, 0.1
        %v844 = vmul.f32 %v780, 0.1
        %v845 = vmul.f32 %v781, 0.1
        %v846 = vmul.f32 %v782, 0.1
        %v847 = vmul.f32 %v783, 0.1
        %v848 = vmul.f32 %v784, 0.1
        %v849 = vmul.f32 %v785, 0.1
        %v850 = vmul.f32 %v786, 0.1
        %v851 = vmul.f32 %v787, 0.1
        %v852 = vmul.f32 %v788, 0.1
        %v853 = vmul.f32 %v789, 0.1
        %v854 = vmul.f32 %v790, 0.1
        %v855 = vmul.f32 %v791, 0.1
        %v856 = vmul.f32 %v792, 0.1
        %v857 = vmul.f32 %v793, 0.1
        %v858 = vmul.f32 %v794, 0.1
        %v859 = vmul.f32 %v795, 0.1
        %v860 = vmul.f32 %v796, 0.1
        %v861 = vmul.f32 %v797, 0.1
        %v862 = vmul.f32 %v798, 0.1
        %v863 = vmul.f32 %v799, 0.1
        %v864 = vmul.f32 %v800, 0.1
        %v865 = vmul.f32 %v801, 0.1
        %v866 = vmul.f32 %v802, 0.1
        %v867 = vmul.f32 %v803, 0.1
        %v868 = vmul.f32 %v804, 0.1
        %v869 = vmul.f32 %v805, 0.1
        %v870 = vmul.f32 %v806, 0.1
        %v871 = vmul.f32 %v807, 0.1
        %v872 = vmul.f32 %v808, 0.1
        %v873 = vmul.f32 %v809, 0.1
        %v874 = vsel %vm810, %v778, %v842
        %v875 = vsel %vm811, %v779, %v843
        %v876 = vsel %vm812, %v780, %v844
        %v877 = vsel %vm813, %v781, %v845
        %v878 = vsel %vm814, %v782, %v846
        %v879 = vsel %vm815, %v783, %v847
        %v880 = vsel %vm816, %v784, %v848
        %v881 = vsel %vm817, %v785, %v849
        %v882 = vsel %vm818, %v786, %v850
        %v883 = vsel %vm819, %v787, %v851
        %v884 = vsel %vm820, %v788, %v852
        %v885 = vsel %vm821, %v789, %v853
        %v886 = vsel %vm822, %v790, %v854
        %v887 = vsel %vm823, %v791, %v855
        %v888 = vsel %vm824, %v792, %v856
        %v889 = vsel %vm825, %v793, %v857
        %v890 = vsel %vm826, %v794, %v858
        %v891 = vsel %vm827, %v795, %v859
        %v892 = vsel %vm828, %v796, %v860
        %v893 = vsel %vm829, %v797, %v861
        %v894 = vsel %vm830, %v798, %v862
        %v895 = vsel %vm831, %v799, %v863
        %v896 = vsel %vm832, %v800, %v864
        %v897 = vsel %vm833, %v801, %v865
        %v898 = vsel %vm834, %v802, %v866
        %v899 = vsel %vm835, %v803, %v867
        %v900 = vsel %vm836, %v804, %v868
        %v901 = vsel %vm837, %v805, %v869
        %v902 = vsel %vm838, %v806, %v870
        %v903 = vsel %vm839, %v807, %v871
        %v904 = vsel %vm840, %v808, %v872
        %v905 = vsel %vm841, %v809, %v873
        %906 = vst [vmem:[%s257] sm:$0xff] %v874
        %907 = vst [vmem:[%s257 + $0x8] sm:$0xff] %v875
        %908 = vst [vmem:[%s257 + $0x10] sm:$0xff] %v876
        %909 = vst [vmem:[%s257 + $0x18] sm:$0xff] %v877
        %910 = vst [vmem:[%s257 + $0x20] sm:$0xff] %v878
        %911 = vst [vmem:[%s257 + $0x28] sm:$0xff] %v879
        %912 = vst [vmem:[%s257 + $0x30] sm:$0xff] %v880
        %913 = vst [vmem:[%s257 + $0x38] sm:$0xff] %v881
        %914 = vst [vmem:[%s257 + $0x40] sm:$0xff] %v882
        %915 = vst [vmem:[%s257 + $0x48] sm:$0xff] %v883
        %916 = vst [vmem:[%s257 + $0x50] sm:$0xff] %v884
        %917 = vst [vmem:[%s257 + $0x58] sm:$0xff] %v885
        %918 = vst [vmem:[%s257 + $0x60] sm:$0xff] %v886
        %919 = vst [vmem:[%s257 + $0x68] sm:$0xff] %v887
        %920 = vst [vmem:[%s257 + $0x70] sm:$0xff] %v888
        %921 = vst [vmem:[%s257 + $0x78] sm:$0xff] %v889
        %922 = vst [vmem:[%s257 + $0x80] sm:$0xff] %v890
        %923 = vst [vmem:[%s257 + $0x88] sm:$0xff] %v891
        %924 = vst [vmem:[%s257 + $0x90] sm:$0xff] %v892
        %925 = vst [vmem:[%s257 + $0x98] sm:$0xff] %v893
        %926 = vst [vmem:[%s257 + $0xa0] sm:$0xff] %v894
        %927 = vst [vmem:[%s257 + $0xa8] sm:$0xff] %v895
        %928 = vst [vmem:[%s257 + $0xb0] sm:$0xff] %v896
        %929 = vst [vmem:[%s257 + $0xb8] sm:$0xff] %v897
        %930 = vst [vmem:[%s257 + $0xc0] sm:$0xff] %v898
        %931 = vst [vmem:[%s257 + $0xc8] sm:$0xff] %v899
        %932 = vst [vmem:[%s257 + $0xd0] sm:$0xff] %v900
        %933 = vst [vmem:[%s257 + $0xd8] sm:$0xff] %v901
        %934 = vst [vmem:[%s257 + $0xe0] sm:$0xff] %v902
        %935 = vst [vmem:[%s257 + $0xe8] sm:$0xff] %v903
        %936 = vst [vmem:[%s257 + $0xf0] sm:$0xff] %v904
        %937 = vst [vmem:[%s257 + $0xf8] sm:$0xff] %v905
      $region40: #{tpu_custom_call.1} parent=31 // pred_fallthru
        _
      %s938 = smul.u32 32, %s19
      %p939 = scmp.lt.s32.totalorder %s938, 255
      %s940 = scalar_select %p939, %s938, 255
      %p941 = scmp.lt.s32.totalorder %s20, 0
      %s942 = scalar_select %p941, %s20, 0
      %s943 = sadd.s32 %s942, %s940
      %s944 = smul.addr %s943, 8
      %s945 = scalar_lea.vmem %s3, %s944
      // Predicated region
      $region41: #{tpu_custom_call.1} parent=31 // pred_check
        %p946 = pneg %p135
      $region42: #{tpu_custom_call.1} parent=31 // pred_check_branch
        %948 = sbr.rel (%p946) target = $region44
      $region43: #{tpu_custom_call.1} parent=31 // pred_region
        %s949 = smul.u32 32, %s19
      $region44: #{tpu_custom_call.1} parent=31 // pred_fallthru
        _
    $region32: #{tpu_custom_call.1} parent=5 // pred_fallthru
      _
    %p950 = scmp.le.s32.totalorder 2, %s9
    // Predicated region
    $region45: #{tpu_custom_call.1} parent=5 // pred_check
      %p951 = pneg %p950
    $region46: #{tpu_custom_call.1} parent=5 // pred_check_branch
      %953 = sbr.rel (%p951) target = $region48
    $region47: #{tpu_custom_call.1} parent=5 // pred_region
      %s954 = ssub.s32 %s9, 2
      // Predicated region
      $region49: #{tpu_custom_call.1} parent=47 // pred_check
        %p955 = pneg %p141
      $region50: #{tpu_custom_call.1} parent=47 // pred_check_branch
        %957 = sbr.rel (%p955) target = $region52
      $region51: #{tpu_custom_call.1} parent=47 // pred_region
        %s958 = smul.u32 32, %s22
        %p959 = scmp.lt.s32.totalorder %s958, 255
        %s960 = scalar_select %p959, %s958, 255
        %p961 = scmp.lt.s32.totalorder %s23, 0
        %s962 = scalar_select %p961, %s23, 0
        %s963 = sadd.s32 %s962, %s960
        %s964 = smul.addr %s963, 8
        %s965 = scalar_lea.vmem %s3, %s964
      $region52: #{tpu_custom_call.1} parent=47 // pred_fallthru
        _
    $region48: #{tpu_custom_call.1} parent=5 // pred_fallthru
      _
  $region6: #{tpu_custom_call.1} parent=0 // loop_footer
    %s13 = sadd.s32 1, %s9
  $region7: #{tpu_custom_call.1} parent=0 // loop_footer_branch
    %8 = sbr.rel target = $region3
  $region8: #{tpu_custom_call.1} parent=0 // loop_exit
    _

</llo_original>
